<compile_context>
chip_gen: v6e
topology: v6e:2x2x1
jax: 0.10.0
libtpu: 0.0.40
codegen_flags: <defaults>
</compile_context>

<pallas_src>
import functools

import jax
import jax.numpy as jnp
from jax.experimental import pallas as pl
from jax.experimental.pallas import tpu as pltpu

_MIB = 1024 * 1024


def _neg_ce_kernel(x_ref, t_ref, out_ref, acc_ref, *,
                   n_rows, tile_n, tiles_per_split):
    s = pl.program_id(0)          # split (parallel / per-TensorCore) index
    i = pl.program_id(1)          # row-tile (reduction) index within the split

    @pl.when(i == 0)
    def _():
        acc_ref[...] = jnp.zeros_like(acc_ref)

    x = x_ref[...].astype(jnp.float32)            # (tile_n, C), upcast in vregs
    t = t_ref[...]                                # (tile_n, 1) int32

    # Numerically stable log-softmax pieces along the class (lane) axis.
    m = jnp.max(x, axis=-1, keepdims=True)        # (tile_n, 1)
    xm = x - m                                    # <= 0 everywhere
    lse = jnp.log(jnp.sum(jnp.exp(xm), axis=-1, keepdims=True))   # (tile_n, 1)

    # Fused one-hot gather of the (max-shifted) target logit; the shift by m
    # cancels: log_prob = (x_t - m) - log(sum(exp(x - m))).
    col = jax.lax.broadcasted_iota(jnp.int32, x.shape, 1)          # (tile_n, C)
    target_xm = jnp.sum(jnp.where(col == t, xm, 0.0), axis=-1, keepdims=True)

    log_prob = target_xm - lse                    # (tile_n, 1)

    # Mask rows past the true batch size (ragged last tile, sublane padding,
    # and the duplicated overhang tile of the always-2-way split).
    row0 = (s * tiles_per_split + i) * tile_n
    row = jax.lax.broadcasted_iota(jnp.int32, (tile_n, 1), 0) + row0
    log_prob = jnp.where(row < n_rows, log_prob, 0.0)

    # TODO(synk): move to a per-sublane (8,1) accumulator if a bundle dump ever
    # shows the XLU slot saturated by this per-tile sublane reduction.
    acc_ref[...] += jnp.sum(log_prob, axis=0, keepdims=True)       # (1, 1)

    @pl.when(i == tiles_per_split - 1)
    def _():
        # Lane-dense (1, 128) write, once per split.
        out_ref[...] = jnp.broadcast_to(acc_ref[...], out_ref.shape)


def _vmem_budgets():
    """(live-bytes budget used for tiling, vmem_limit_bytes) per TPU generation."""
    live, limit = 36 * _MIB, 48 * _MIB            # safe on v7x (64 MiB physical VMEM)
    try:
        info = pltpu.get_tpu_info()
        cap = getattr(info, "vmem_capacity_bytes", None)
        if cap is not None and cap >= 96 * _MIB:  # v5e / v6e: 128 MiB VMEM per core
            live, limit = 72 * _MIB, 96 * _MIB
    except Exception:
        pass
    return live, limit


def negative_cross_entropy_loss(inputs, targets, *, tile_rows=None):
    """inputs: (N, C) float logits; targets: (N,) int class ids. Returns f32 scalar."""
    n, c = inputs.shape
    t2d = targets.astype(jnp.int32).reshape(n, 1)

    itemsize = jnp.dtype(inputs.dtype).itemsize
    sublane = {4: 8, 2: 16, 1: 32}.get(itemsize, 8)
    n_rounded = ((n + sublane - 1) // sublane) * sublane

    live_budget, vmem_limit = _vmem_budgets()

    if tile_rows is None:
        # Live VMEM per tile row:
        #   2x double-buffered logits block (input dtype, lanes padded to 128)
        # + ~3x f32 intermediates from the in-kernel upcast (x_f32 / xm / exp(xm))
        # + 2x double-buffered (tile_n, 1) int32 target block (lane-padded to 128).
        c_pad = ((c + 127) // 128) * 128
        per_row = 2 * c_pad * itemsize + 3 * c_pad * 4 + 2 * 128 * 4
        tile_n = (live_budget // per_row) // sublane * sublane
        tile_n = max(sublane, tile_n)
    else:  # explicit override (used by the self-test to exercise the split path)
        tile_n = max(sublane, (tile_rows + sublane - 1) // sublane * sublane)
    tile_n = min(tile_n, n_rounded)

    tiles_total = pl.cdiv(n, tile_n)
    # Always split rows two ways when there is more than one tile so both of
    # v7x's TensorCores stream half the rows; on 1-TC chips (v5e/v6e) the split
    # axis simply iterates serially.  Odd tile counts duplicate the last tile
    # on split 1; its rows are >= n and masked to zero inside the kernel.
    n_splits = 2 if tiles_total >= 2 else 1
    tiles_per_split = pl.cdiv(tiles_total, n_splits)
    last_tile = tiles_total - 1

    kernel = functools.partial(
        _neg_ce_kernel, n_rows=n, tile_n=tile_n, tiles_per_split=tiles_per_split)

    def row_tile_map(s, i):
        # Clamp so the overhang step of an odd split re-reads the last real tile
        # (its contribution is masked to zero in the kernel).
        return (jnp.minimum(s * tiles_per_split + i, last_tile), 0)

    cost = pl.CostEstimate(
        flops=int(5 * n * c),
        transcendentals=int(n * c + n),
        bytes_accessed=int(n * c * itemsize + n * 4 + n_splits * 128 * 4),
    )

    out = pl.pallas_call(
        kernel,
        out_shape=jax.ShapeDtypeStruct((1, n_splits * 128), jnp.float32),
        grid_spec=pltpu.PrefetchScalarGridSpec(
            num_scalar_prefetch=0,
            grid=(n_splits, tiles_per_split),
            in_specs=[
                pl.BlockSpec((tile_n, c), row_tile_map),
                pl.BlockSpec((tile_n, 1), row_tile_map),
            ],
            out_specs=pl.BlockSpec((1, 128), lambda s, i: (0, s)),
            scratch_shapes=[pltpu.VMEM((1, 1), jnp.float32)],
        ),
        compiler_params=pltpu.CompilerParams(
            dimension_semantics=("parallel", "arbitrary"),
            vmem_limit_bytes=int(vmem_limit),
        ),
        cost_estimate=cost,
    )(inputs, t2d)

    partial_sums = out.reshape(n_splits, 128)[:, 0]
    # -CrossEntropyLoss (mean reduction) == mean(log_softmax[target]).
    # Per-split f32 running sums; fine for typical N.
    # TODO(synk): Kahan / per-sublane partials if N grows past ~1e7 rows.
    return jnp.sum(partial_sums) / jnp.float32(n)


if __name__ == "__main__":
    key = jax.random.PRNGKey(0)

    def _check(n, c, tile_rows=None):
        k_x, k_t = jax.random.split(jax.random.fold_in(key, n * 131 + c))
        x = jax.random.normal(k_x, (n, c), dtype=jnp.float32)
        t = jax.random.randint(k_t, (n,), 0, c, dtype=jnp.int32)
        got = negative_cross_entropy_loss(x, t, tile_rows=tile_rows)
        jax.block_until_ready(got)
        logp = jax.nn.log_softmax(x, axis=-1)
        ref = jnp.mean(logp[jnp.arange(n), t])
        assert jnp.allclose(got, ref, atol=1e-5, rtol=1e-5), (n, c, got, ref)

    # Small shapes consistent with CrossEntropyLoss((N, C), (N,)).
    _check(8, 32)
    # Ragged batch + class count that is not a multiple of 128.
    _check(13, 160)
    # Forced tiny tile -> odd tile count -> exercises the always-2-way split
    # with the clamped / masked duplicated overhang tile.
    _check(40, 160, tile_rows=8)

    print("KERNEL_OK")
</pallas_src>

<mosaic_0001>
module attributes {stable_mosaic.version = 11 : i64} {
  func.func @_neg_ce_kernel(%arg0: i32, %arg1: i32, %arg2: memref<8x32xf32, #tpu.memory_space<vmem>>, %arg3: memref<8x1xi32, #tpu.memory_space<vmem>>, %arg4: memref<1x128xf32, #tpu.memory_space<vmem>>, %arg5: memref<1x1xf32, #tpu.memory_space<vmem>>) attributes {dimension_semantics = [#tpu.dimension_semantics<parallel>, #tpu.dimension_semantics<arbitrary>], iteration_bounds = array<i64: 1, 1>, scalar_prefetch = 0 : i64, scratch_operands = 1 : i64, tpu.core_type = #tpu.core_type<tc>, window_params = [{transform_indices = @transform_0, window_bounds = array<i64: 8, 32>}, {transform_indices = @transform_1, window_bounds = array<i64: 8, 1>}, {transform_indices = @transform_2, window_bounds = array<i64: 1, 128>}]} {
    %c0_i32 = arith.constant 0 : i32
    %0 = arith.cmpi eq, %arg1, %c0_i32 : i32
    %1 = arith.extui %0 : i1 to i32
    %c0_i32_0 = arith.constant 0 : i32
    %2 = arith.cmpi ne, %1, %c0_i32_0 : i32
    scf.if %2 {
      %cst_16 = arith.constant 0.000000e+00 : f32
      %39 = vector.broadcast %cst_16 : f32 to vector<1x1xf32>
      %c0_17 = arith.constant 0 : index
      %c0_18 = arith.constant 0 : index
      %40 = vector.load %arg5[%c0_17, %c0_18] : memref<1x1xf32, #tpu.memory_space<vmem>>, vector<1x1xf32>
      tpu.vector_store %arg5[%c0_17, %c0_18], %39 {strides = array<i32>} : memref<1x1xf32, #tpu.memory_space<vmem>>, vector<1x1xf32>,
    } else {
    }
    %c0 = arith.constant 0 : index
    %c0_1 = arith.constant 0 : index
    %3 = vector.load %arg2[%c0, %c0_1] : memref<8x32xf32, #tpu.memory_space<vmem>>, vector<8x32xf32>
    %c0_2 = arith.constant 0 : index
    %c0_3 = arith.constant 0 : index
    %4 = vector.load %arg3[%c0_2, %c0_3] : memref<8x1xi32, #tpu.memory_space<vmem>>, vector<8x1xi32>
    %cst = arith.constant dense<0xFF800000> : vector<8xf32>
    %5 = vector.multi_reduction <maximumf>, %3, %cst [1] : vector<8x32xf32> to vector<8xf32>
    %6 = vector.shape_cast %5 : vector<8xf32> to vector<8x1xf32>
    %7 = vector.broadcast %6 : vector<8x1xf32> to vector<8x32xf32>
    %8 = arith.subf %3, %7 : vector<8x32xf32>
    %9 = math.exp %8 : vector<8x32xf32>
    %cst_4 = arith.constant dense<0.000000e+00> : vector<8xf32>
    %10 = vector.multi_reduction <add>, %9, %cst_4 [1] : vector<8x32xf32> to vector<8xf32>
    %11 = vector.shape_cast %10 : vector<8xf32> to vector<8x1xf32>
    %12 = math.log %11 : vector<8x1xf32>
    %13 = tpu.iota {dimensions = array<i32: 1>} : vector<8x32xi32>
    %14 = vector.broadcast %4 : vector<8x1xi32> to vector<8x32xi32>
    %15 = arith.cmpi eq, %13, %14 : vector<8x32xi32>
    %cst_5 = arith.constant 0.000000e+00 : f32
    %16 = vector.broadcast %cst_5 : f32 to vector<8x32xf32>
    %17 = arith.select %15, %8, %16 : vector<8x32xi1>, vector<8x32xf32>
    %cst_6 = arith.constant dense<0.000000e+00> : vector<8xf32>
    %18 = vector.multi_reduction <add>, %17, %cst_6 [1] : vector<8x32xf32> to vector<8xf32>
    %19 = vector.shape_cast %18 : vector<8xf32> to vector<8x1xf32>
    %20 = arith.subf %19, %12 : vector<8x1xf32>
    %c1_i32 = arith.constant 1 : i32
    %21 = arith.muli %arg0, %c1_i32 : i32
    %22 = arith.addi %21, %arg1 : i32
    %c8_i32 = arith.constant 8 : i32
    %23 = arith.muli %22, %c8_i32 : i32
    %24 = tpu.iota {dimensions = array<i32: 0>} : vector<8x1xi32>
    %25 = vector.broadcast %23 : i32 to vector<8x1xi32>
    %26 = arith.addi %24, %25 : vector<8x1xi32>
    %c8_i32_7 = arith.constant 8 : i32
    %27 = vector.broadcast %c8_i32_7 : i32 to vector<8x1xi32>
    %28 = arith.cmpi slt, %26, %27 : vector<8x1xi32>
    %cst_8 = arith.constant 0.000000e+00 : f32
    %29 = vector.broadcast %cst_8 : f32 to vector<8x1xf32>
    %30 = arith.select %28, %20, %29 : vector<8x1xi1>, vector<8x1xf32>
    %c0_9 = arith.constant 0 : index
    %c0_10 = arith.constant 0 : index
    %31 = vector.load %arg5[%c0_9, %c0_10] : memref<1x1xf32, #tpu.memory_space<vmem>>, vector<1x1xf32>
    %cst_11 = arith.constant dense<0.000000e+00> : vector<1xf32>
    %32 = vector.multi_reduction <add>, %30, %cst_11 [0] : vector<8x1xf32> to vector<1xf32>
    %33 = vector.shape_cast %32 : vector<1xf32> to vector<1x1xf32>
    %34 = arith.addf %31, %33 : vector<1x1xf32>
    %c0_12 = arith.constant 0 : index
    %c0_13 = arith.constant 0 : index
    %35 = vector.load %arg5[%c0_12, %c0_13] : memref<1x1xf32, #tpu.memory_space<vmem>>, vector<1x1xf32>
    tpu.vector_store %arg5[%c0_12, %c0_13], %34 {strides = array<i32>} : memref<1x1xf32, #tpu.memory_space<vmem>>, vector<1x1xf32>,
    %c0_i32_14 = arith.constant 0 : i32
    %36 = arith.cmpi eq, %arg1, %c0_i32_14 : i32
    %37 = arith.extui %36 : i1 to i32
    %c0_i32_15 = arith.constant 0 : i32
    %38 = arith.cmpi ne, %37, %c0_i32_15 : i32
    scf.if %38 {
      %c0_16 = arith.constant 0 : index
      %c0_17 = arith.constant 0 : index
      %39 = vector.load %arg5[%c0_16, %c0_17] : memref<1x1xf32, #tpu.memory_space<vmem>>, vector<1x1xf32>
      %40 = vector.shape_cast %39 : vector<1x1xf32> to vector<1x1xf32>
      %41 = vector.broadcast %40 : vector<1x1xf32> to vector<1x128xf32>
      %c0_18 = arith.constant 0 : index
      %c0_19 = arith.constant 0 : index
      %42 = vector.load %arg4[%c0_18, %c0_19] : memref<1x128xf32, #tpu.memory_space<vmem>>, vector<1x128xf32>
      tpu.vector_store %arg4[%c0_18, %c0_19], %41 {strides = array<i32>} : memref<1x128xf32, #tpu.memory_space<vmem>>, vector<1x128xf32>,
    } else {
    }
    return
  }
  func.func @transform_0(%arg0: i32, %arg1: i32) -> (i32, i32) {
    %c1_i32 = arith.constant 1 : i32
    %0 = arith.muli %arg0, %c1_i32 : i32
    %1 = arith.addi %0, %arg1 : i32
    %c0_i32 = arith.constant 0 : i32
    %2 = arith.minsi %1, %c0_i32 : i32
    %c0_i32_0 = arith.constant 0 : i32
    %c0_i32_1 = arith.constant 0 : i32
    return %2, %c0_i32_0 : i32, i32
  }
  func.func @transform_1(%arg0: i32, %arg1: i32) -> (i32, i32) {
    %c1_i32 = arith.constant 1 : i32
    %0 = arith.muli %arg0, %c1_i32 : i32
    %1 = arith.addi %0, %arg1 : i32
    %c0_i32 = arith.constant 0 : i32
    %2 = arith.minsi %1, %c0_i32 : i32
    %c0_i32_0 = arith.constant 0 : i32
    %c0_i32_1 = arith.constant 0 : i32
    return %2, %c0_i32_0 : i32, i32
  }
  func.func @transform_2(%arg0: i32, %arg1: i32) -> (i32, i32) {
    %c0_i32 = arith.constant 0 : i32
    %c0_i32_0 = arith.constant 0 : i32
    return %c0_i32, %arg0 : i32, i32
  }
}

</mosaic_0001>

<llo_original>
// kernel: tpu_custom_call.1
$region0: #{tpu_custom_call.1}
  #allocation0 [shape = 'u32[]', space=smem, size = 0x4, offset = 0x4, fixed_abs, tag = 'smem constant byte address 0x4 - core index']
  #allocation1 [shape = 'u32[144,128]{1,0:T(1,128)}', space=vmem, size = 0x12000, scoped, tag = 'internal scratch']
  #allocation2 [shape = 'f32[1,1]{1,0:T(1,128)}', space=vmem, size = 0x200, scoped, tag = 'scratch operand']
  %s0 = inlined_call_operand.vmem [shape: f32[8,32], index: 0, kind: input, shape index: {}]
  %s1 = inlined_call_operand.vmem [shape: s32[8,1], index: 1, kind: input, shape index: {}]
  %s2 = inlined_call_operand.hbm [shape: f32[1,128], index: 2, kind: output, shape index: {}]
  %s3 = sld [smem:[#allocation0]]
  $region26: #{tpu_custom_call.1} parent=0
    _
  %s5 = ssub.s32 1, %s3
  %s6 = scalar_select 0, %s5, %s3
  $region1: #{tpu_custom_call.1} parent=0
    #allocation3 [shape = 'u8[512]{0}', space=vmem, size = 0x400, scoped, tag = 'output window, operand 0, single buffered']
    #allocation4 [shape = 's32[1]{0}', space=sflag, size = 0x4, scoped, tag = 'scoped memory for tpu_custom_call.1']
    %7 = vsyncpa [#allocation4], 0
    // Predicated region
    $region2: #{tpu_custom_call.1} parent=1 // pred_check
      _
    $region3: #{tpu_custom_call.1} parent=1 // pred_check_branch
      %9 = sbr.rel (0) target = $region5
    $region4: #{tpu_custom_call.1} parent=1 // pred_region
      %s10 = sadd.s32 0, 0
      %p11 = scmp.lt.s32.totalorder %s10, 0
      %s12 = scalar_select %p11, %s10, 0
      %p13 = scmp.lt.s32.totalorder %s12, 0
      %s14 = scalar_select %p13, %s12, 0
      %s15 = smul.addr %s14, 8
      %s16 = scalar_lea.vmem %s0, %s15
      %s17 = sadd.s32 0, 0
      %p18 = scmp.lt.s32.totalorder %s17, 0
      %s19 = scalar_select %p18, %s17, 0
    $region5: #{tpu_custom_call.1} parent=1 // pred_fallthru
      _
    // Predicated region
    $region6: #{tpu_custom_call.1} parent=1 // pred_check
      _
    $region7: #{tpu_custom_call.1} parent=1 // pred_check_branch
      %21 = sbr.rel (0) target = $region9
    $region8: #{tpu_custom_call.1} parent=1 // pred_region
      %s22 = sadd.s32 0, 0
      %p23 = scmp.lt.s32.totalorder %s22, 0
      %s24 = scalar_select %p23, %s22, 0
      %p25 = scmp.lt.s32.totalorder %s24, 0
      %s26 = scalar_select %p25, %s24, 0
      %s27 = smul.addr %s26, 8
      %s28 = scalar_lea.vmem %s1, %s27
      %s29 = sadd.s32 0, 0
      %p30 = scmp.lt.s32.totalorder %s29, 0
      %s31 = scalar_select %p30, %s29, 0
    $region9: #{tpu_custom_call.1} parent=1 // pred_fallthru
      _
    %s32 = sadd.s32 0, 0
    %p33 = scmp.lt.s32.totalorder %s32, 0
    %s34 = scalar_select %p33, %s32, 0
    %p35 = scmp.lt.s32.totalorder %s34, 0
    %s36 = scalar_select %p35, %s34, 0
    %s37 = smul.addr %s36, 8
    %s38 = scalar_lea.vmem %s0, %s37
    %s39 = sadd.s32 0, 0
    %p40 = scmp.lt.s32.totalorder %s39, 0
    %s41 = scalar_select %p40, %s39, 0
    %p42 = scmp.lt.s32.totalorder %s41, 0
    %s43 = scalar_select %p42, %s41, 0
    %s44 = smul.addr %s43, 8
    %s45 = scalar_lea.vmem %s1, %s44
    %s46 = sadd.s32 0, 0
    %p47 = scmp.lt.s32.totalorder %s46, 0
    %s48 = scalar_select %p47, %s46, 0
    %p49 = scmp.lt.s32.totalorder %s48, 0
    %s50 = scalar_select %p49, %s48, 0
    %s51 = smul.addr %s50, 8
    %s52 = scalar_lea.vmem %s0, %s51
    %s53 = sadd.s32 0, 0
    %p54 = scmp.lt.s32.totalorder %s53, 0
    %s55 = scalar_select %p54, %s53, 0
    %s56 = sadd.s32 0, 0
    %p57 = scmp.lt.s32.totalorder %s56, 0
    %s58 = scalar_select %p57, %s56, 0
    %p59 = scmp.lt.s32.totalorder %s58, 0
    %s60 = scalar_select %p59, %s58, 0
    %s61 = smul.addr %s60, 8
    %s62 = scalar_lea.vmem %s1, %s61
    %s63 = sadd.s32 0, 0
    %p64 = scmp.lt.s32.totalorder %s63, 0
    %s65 = scalar_select %p64, %s63, 0
    %p66 = scmp.eq.s32.totalorder 0, 0
    // Predicated region
    $region10: #{tpu_custom_call.1} parent=1 // pred_check
      %p67 = pneg %p66
    $region11: #{tpu_custom_call.1} parent=1 // pred_check_branch
      %69 = sbr.rel (%p67) target = $region13
    $region12: #{tpu_custom_call.1} parent=1 // pred_region
      %vm70 = vcmask 0
      %71 = vst.msk [vmem:[#allocation2] sm:$0x1] %vm70, 0.0
    $region13: #{tpu_custom_call.1} parent=1 // pred_fallthru
      _
    %v72 = vld [vmem:[%s52] sm:$0xff]
    %v73 = vld [vmem:[%s62] sm:$0xff]
    %vm74 = vcmask 261120
    %v75 = vsel %vm74, %v72, -inf
    %76 = vmax.xlane.f32.xlu0 %v75
    %v77 = vpop.xlane.xlu0 %76
    %v78 = vsub.f32 %v72, %v77
    %v79 = vmul.f32 %v78, 1.442695
    %v80 = vpow.pop %v79
    %v81 = vsel %vm74, %v80, 0.0
    %82 = vadd.xlane.f32.xlu0 %v81
    %v83 = vpop.xlane.xlu0 %82
    %v84 = vlog2.pop %v83
    %v85 = vmul.f32 %v84, 0.6931472
    %v86 = vlaneseq
    %v87 = vand.u32 %v86, 127
    %88 = vset.pattern.permute.xlu0 0
    %89 = vperm.xlu0 %88, %v73
    %v90 = vpop.permute.xlu0 %89
    %vm91 = vcmp.eq.s32.totalorder %v87, %v90
    %v92 = vsel %vm91, %v78, 0.0
    %v93 = vsel %vm74, %v92, 0.0
    %94 = vadd.xlane.f32.xlu0 %v93
    %v95 = vpop.xlane.xlu0 %94
    %v96 = vsub.f32 %v95, %v85
    %s97 = sadd.s32 0, 0
    %s98 = smul.u32 %s97, 8
    %v99 = vlaneseq
    %v100 = vshrl.u32 %v99, 7
    %v101 = vstv %s98
    %v102 = vadd.s32 %v100, %v101
    %vm103 = vcmp.lt.s32.totalorder %v102, 8
    %v104 = vsel %vm103, %v96, 0.0
    %v105 = vld [vmem:[#allocation2] sm:$0x1]
    %v106 = vrot.slane %v104, 4
    %v107 = vadd.f32 %v104, %v106
    %v108 = vrot.slane %v107, 2
    %v109 = vadd.f32 %v107, %v108
    %v110 = vrot.slane %v109, 1
    %v111 = vadd.f32 %v109, %v110
    %v112 = vadd.f32 %v105, %v111
    %vm113 = vcmask 0
    %114 = vst.msk [vmem:[#allocation2] sm:$0x1] %vm113, %v112
    // Predicated region
    $region14: #{tpu_custom_call.1} parent=1 // pred_check
      %p115 = pneg %p66
    $region15: #{tpu_custom_call.1} parent=1 // pred_check_branch
      %117 = sbr.rel (%p115) target = $region17
    $region16: #{tpu_custom_call.1} parent=1 // pred_region
      %v118 = vld [vmem:[#allocation2] sm:$0x1]
      %120 = vset.pattern.permute.xlu0 0
      %121 = vperm.xlu0 %120, %v118
      %v122 = vpop.permute.xlu0 %121
      %v124 = vlaneseq
      %v125 = vshrl.u32 %v124, 7
      %v126 = vsub.s32 0, %v125
      %v127 = vrot.slane %v122, %v126
      %128 = vst [vmem:[#allocation3] sm:$0x1] %v127
    $region17: #{tpu_custom_call.1} parent=1 // pred_fallthru
      _
    // Predicated region
    $region18: #{tpu_custom_call.1} parent=1 // pred_check
      _
    $region19: #{tpu_custom_call.1} parent=1 // pred_check_branch
      %130 = sbr.rel (0) target = $region21
    $region20: #{tpu_custom_call.1} parent=1 // pred_region
      %s132 = ssub.s32 16, 16
      %133 = vsyncadd [#allocation4], %s132
      %s135 = sshll.u32 [#allocation3], 4
      %s136 = int_to_ptr.vmem [resolvable:$true] %s135
      %138 = dma.vmem_to_hbm [thread:$0]  %s136, 16, %s2, [#allocation4]
    $region21: #{tpu_custom_call.1} parent=1 // pred_fallthru
      _
    // Predicated region
    $region22: #{tpu_custom_call.1} parent=1 // pred_check
      _
    $region23: #{tpu_custom_call.1} parent=1 // pred_check_branch
      %140 = sbr.rel (0) target = $region25
    $region24: #{tpu_custom_call.1} parent=1 // pred_region
      %141 = dma.done [#allocation4], 16
    $region25: #{tpu_custom_call.1} parent=1 // pred_fallthru
      _
    %142 = vsyncpa [#allocation4], 1

</llo_original>
